<compile_context>
chip_gen: v7x
topology: tpu7x:2x2x1
jax: 0.10.0
libtpu: 0.0.40
codegen_flags: <defaults>
</compile_context>

<pallas_src>
import jax
import jax.numpy as jnp
from jax.experimental import pallas as pl
from jax.experimental.pallas import tpu as pltpu

# ----------------------------- sizes (small) ------------------------------
NUM_CLASSES = 2          # module default
N_ROIS      = 16         # number of RoIs fed to the box head (synthetic)
ROI_C       = 4          # channels of RoI-pooled features (small synthetic)
ROI_P       = 8          # pooled spatial size (Ph = Pw = 8)
FLAT_IN     = ROI_C * ROI_P * ROI_P          # flattened roi feature dim = 256
REP         = 128        # representation size of TwoMLPHead (small synthetic)
CLS_OUT     = NUM_CLASSES                    # 2
BOX_OUT     = NUM_CLASSES * 4                # 8
HEAD_OUT    = CLS_OUT + BOX_OUT              # 10 (fused head, pre-pad)
HEAD_PAD    = 128                            # lane-dense fused head width
TM          = 128                            # RoI row tile (matches MXU rows)


# ------------------------------ Pallas kernel -----------------------------
def _roi_head_kernel(x_ref,
                     w6_ref, b6_ref,
                     w7_ref, b7_ref,
                     wh_ref, bh_ref,
                     out_ref):
    """box head (2 x Linear+ReLU) + fused FastRCNNPredictor (1 x Linear).

    x_ref:  [TM, FLAT_IN] bf16        (RoI-pooled features, row tile)
    w*_ref: bf16 weights stored [in, out]
    b*_ref: f32 biases [1, out]
    out_ref:[TM, HEAD_PAD] f32        lane-dense fused (cls | bbox | zero-pad)
    """
    # fc6 -> ReLU (bf16 MXU operands, f32 accumulate, f32 epilogue)
    h = jnp.dot(x_ref[...], w6_ref[...], preferred_element_type=jnp.float32)
    h = jnp.maximum(h + b6_ref[...], 0.0)                    # [TM, REP] f32

    # fc7 -> ReLU
    h = jnp.dot(h.astype(jnp.bfloat16), w7_ref[...],
                preferred_element_type=jnp.float32)
    h = jnp.maximum(h + b7_ref[...], 0.0)                    # [TM, REP] f32

    # fused predictor head: single lane-dense 128-wide output
    o = jnp.dot(h.astype(jnp.bfloat16), wh_ref[...],
                preferred_element_type=jnp.float32)
    out_ref[...] = o + bh_ref[...]                           # [TM, HEAD_PAD]


def roi_head_forward(roi_feats_nchw, params):
    """Flatten RoI features (glue), pad M to a 128-row tile, run the kernel."""
    n = roi_feats_nchw.shape[0]
    x = roi_feats_nchw.reshape(n, -1).astype(jnp.bfloat16)   # [N, FLAT_IN]

    m_pad = pl.cdiv(n, TM) * TM
    if m_pad != n:
        x = jnp.pad(x, ((0, m_pad - n), (0, 0)))             # [M_pad, FLAT_IN]

    # Fuse cls + bbox weights into one lane-dense [REP, 128] matrix (+bias).
    wh = jnp.concatenate([params["wc"], params["wb"]], axis=1)
    wh = jnp.pad(wh, ((0, 0), (0, HEAD_PAD - HEAD_OUT))).astype(jnp.bfloat16)
    bh = jnp.concatenate([params["bc"], params["bb"]], axis=1)
    bh = jnp.pad(bh, ((0, 0), (0, HEAD_PAD - HEAD_OUT))).astype(jnp.float32)

    grid = (m_pad // TM,)

    flops = 2 * m_pad * (FLAT_IN * REP + REP * REP + REP * HEAD_PAD)
    bytes_accessed = (
        m_pad * FLAT_IN * 2                                   # x (bf16)
        + (FLAT_IN * REP + REP * REP + REP * HEAD_PAD) * 2    # weights (bf16)
        + (2 * REP + HEAD_PAD) * 4                            # biases (f32)
        + m_pad * HEAD_PAD * 4                                # fused output
    )

    head = pl.pallas_call(
        _roi_head_kernel,
        out_shape=jax.ShapeDtypeStruct((m_pad, HEAD_PAD), jnp.float32),
        grid_spec=pltpu.PrefetchScalarGridSpec(
            num_scalar_prefetch=0,
            grid=grid,
            in_specs=[
                pl.BlockSpec((TM, FLAT_IN), lambda i: (i, 0)),     # x row tile
                pl.BlockSpec((FLAT_IN, REP), lambda i: (0, 0)),    # w6
                pl.BlockSpec((1, REP),       lambda i: (0, 0)),    # b6
                pl.BlockSpec((REP, REP),     lambda i: (0, 0)),    # w7
                pl.BlockSpec((1, REP),       lambda i: (0, 0)),    # b7
                pl.BlockSpec((REP, HEAD_PAD), lambda i: (0, 0)),   # fused head W
                pl.BlockSpec((1, HEAD_PAD),  lambda i: (0, 0)),    # fused head b
            ],
            out_specs=pl.BlockSpec((TM, HEAD_PAD), lambda i: (i, 0)),
        ),
        compiler_params=pltpu.CompilerParams(
            dimension_semantics=("parallel",)),
        cost_estimate=pl.CostEstimate(
            flops=flops, transcendentals=0, bytes_accessed=bytes_accessed),
    )(x,
      params["w6"], params["b6"],
      params["w7"], params["b7"],
      wh, bh)

    cls_logits  = head[:n, :CLS_OUT]
    bbox_deltas = head[:n, CLS_OUT:HEAD_OUT]
    return cls_logits, bbox_deltas


# ------------------------- deterministic parameters ------------------------
def init_params(key):
    ks = jax.random.split(key, 8)
    scale = 0.02
    def w(k, shape):                      # bf16 weights, [in, out] layout
        return (scale * jax.random.normal(k, shape, jnp.float32)
                ).astype(jnp.bfloat16)
    return {
        "w6": w(ks[0], (FLAT_IN, REP)),
        "b6": jnp.zeros((1, REP), jnp.float32),
        "w7": w(ks[1], (REP, REP)),
        "b7": jnp.zeros((1, REP), jnp.float32),
        "wc": w(ks[2], (REP, CLS_OUT)),
        "bc": scale * jax.random.normal(ks[3], (1, CLS_OUT), jnp.float32),
        "wb": w(ks[4], (REP, BOX_OUT)),
        "bb": scale * jax.random.normal(ks[5], (1, BOX_OUT), jnp.float32),
    }


# --------------------------- pure-JAX reference ----------------------------
def roi_head_reference(roi_feats_nchw, p):
    """Mirrors the kernel numerics: bf16 MXU operands, f32 accumulate."""
    def bf(a):
        return a.astype(jnp.bfloat16).astype(jnp.float32)
    x = roi_feats_nchw.reshape(roi_feats_nchw.shape[0], -1)
    h = jnp.maximum(bf(x) @ bf(p["w6"]) + p["b6"], 0.0)
    h = jnp.maximum(bf(h) @ bf(p["w7"]) + p["b7"], 0.0)
    cls = bf(h) @ bf(p["wc"]) + p["bc"]
    box = bf(h) @ bf(p["wb"]) + p["bb"]
    return cls, box


if __name__ == "__main__":
    key = jax.random.PRNGKey(0)
    k_img, k_roi, k_par = jax.random.split(key, 3)

    # Images the detector would consume (NCHW) — backbone/RPN/RoIAlign are
    # not translated (see TODO above); they would produce the RoI features.
    x_images = jax.random.normal(k_img, (2, 3, 64, 64), jnp.float32)

    # Synthetic RoI-pooled features (NCHW), the input to the Pallas hot path.
    roi_feats = jax.random.normal(k_roi, (N_ROIS, ROI_C, ROI_P, ROI_P),
                                  jnp.float32)

    params = init_params(k_par)

    cls_logits, bbox_deltas = roi_head_forward(roi_feats, params)
    jax.block_until_ready((cls_logits, bbox_deltas))

    # correctness check against plain-JAX reference
    ref_cls, ref_box = roi_head_reference(roi_feats, params)
    assert cls_logits.shape == (N_ROIS, CLS_OUT)
    assert bbox_deltas.shape == (N_ROIS, BOX_OUT)
    assert jnp.allclose(cls_logits, ref_cls, atol=2e-3, rtol=2e-3)
    assert jnp.allclose(bbox_deltas, ref_box, atol=2e-3, rtol=2e-3)

    print("KERNEL_OK")
</pallas_src>

<mosaic_0001>
module attributes {stable_mosaic.version = 11 : i64} {
  func.func @_roi_head_kernel(%arg0: i32, %arg1: memref<128x256xbf16, #tpu.memory_space<vmem>>, %arg2: memref<256x128xbf16, #tpu.memory_space<vmem>>, %arg3: memref<1x128xf32, #tpu.memory_space<vmem>>, %arg4: memref<128x128xbf16, #tpu.memory_space<vmem>>, %arg5: memref<1x128xf32, #tpu.memory_space<vmem>>, %arg6: memref<128x128xbf16, #tpu.memory_space<vmem>>, %arg7: memref<1x128xf32, #tpu.memory_space<vmem>>, %arg8: memref<128x128xf32, #tpu.memory_space<vmem>>) attributes {dimension_semantics = [#tpu.dimension_semantics<parallel>], iteration_bounds = array<i64: 1>, scalar_prefetch = 0 : i64, scratch_operands = 0 : i64, tpu.core_type = #tpu.core_type<tc>, window_params = [{transform_indices = @transform_0, window_bounds = array<i64: 128, 256>}, {pipeline_mode = #tpu.pipeline_mode<synchronous>, transform_indices = @transform_1, window_bounds = array<i64: 256, 128>}, {pipeline_mode = #tpu.pipeline_mode<synchronous>, transform_indices = @transform_2, window_bounds = array<i64: 1, 128>}, {pipeline_mode = #tpu.pipeline_mode<synchronous>, transform_indices = @transform_3, window_bounds = array<i64: 128, 128>}, {pipeline_mode = #tpu.pipeline_mode<synchronous>, transform_indices = @transform_4, window_bounds = array<i64: 1, 128>}, {pipeline_mode = #tpu.pipeline_mode<synchronous>, transform_indices = @transform_5, window_bounds = array<i64: 128, 128>}, {pipeline_mode = #tpu.pipeline_mode<synchronous>, transform_indices = @transform_6, window_bounds = array<i64: 1, 128>}, {transform_indices = @transform_7, window_bounds = array<i64: 128, 128>}]} {
    %c0 = arith.constant 0 : index
    %c0_0 = arith.constant 0 : index
    %0 = vector.load %arg1[%c0, %c0_0] : memref<128x256xbf16, #tpu.memory_space<vmem>>, vector<128x256xbf16>
    %c0_1 = arith.constant 0 : index
    %c0_2 = arith.constant 0 : index
    %1 = vector.load %arg2[%c0_1, %c0_2] : memref<256x128xbf16, #tpu.memory_space<vmem>>, vector<256x128xbf16>
    %cst = arith.constant dense<0.000000e+00> : vector<128x128xf32>
    %2 = tpu.matmul %0, %1, %cst {dimension_numbers = #tpu.dot_dimension_numbers<[1], [0], [0], [1], [0, 0, 1, 1], [], []>} : vector<128x256xbf16>, vector<256x128xbf16>, vector<128x128xf32> -> vector<128x128xf32>
    %c0_3 = arith.constant 0 : index
    %c0_4 = arith.constant 0 : index
    %3 = vector.load %arg3[%c0_3, %c0_4] : memref<1x128xf32, #tpu.memory_space<vmem>>, vector<1x128xf32>
    %4 = vector.broadcast %3 : vector<1x128xf32> to vector<128x128xf32>
    %5 = arith.addf %2, %4 : vector<128x128xf32>
    %cst_5 = arith.constant 0.000000e+00 : f32
    %6 = vector.broadcast %cst_5 : f32 to vector<128x128xf32>
    %7 = arith.maximumf %5, %6 : vector<128x128xf32>
    %8 = arith.truncf %7 : vector<128x128xf32> to vector<128x128xbf16>
    %c0_6 = arith.constant 0 : index
    %c0_7 = arith.constant 0 : index
    %9 = vector.load %arg4[%c0_6, %c0_7] : memref<128x128xbf16, #tpu.memory_space<vmem>>, vector<128x128xbf16>
    %cst_8 = arith.constant dense<0.000000e+00> : vector<128x128xf32>
    %10 = tpu.matmul %8, %9, %cst_8 {dimension_numbers = #tpu.dot_dimension_numbers<[1], [0], [0], [1], [0, 0, 1, 1], [], []>} : vector<128x128xbf16>, vector<128x128xbf16>, vector<128x128xf32> -> vector<128x128xf32>
    %c0_9 = arith.constant 0 : index
    %c0_10 = arith.constant 0 : index
    %11 = vector.load %arg5[%c0_9, %c0_10] : memref<1x128xf32, #tpu.memory_space<vmem>>, vector<1x128xf32>
    %12 = vector.broadcast %11 : vector<1x128xf32> to vector<128x128xf32>
    %13 = arith.addf %10, %12 : vector<128x128xf32>
    %cst_11 = arith.constant 0.000000e+00 : f32
    %14 = vector.broadcast %cst_11 : f32 to vector<128x128xf32>
    %15 = arith.maximumf %13, %14 : vector<128x128xf32>
    %16 = arith.truncf %15 : vector<128x128xf32> to vector<128x128xbf16>
    %c0_12 = arith.constant 0 : index
    %c0_13 = arith.constant 0 : index
    %17 = vector.load %arg6[%c0_12, %c0_13] : memref<128x128xbf16, #tpu.memory_space<vmem>>, vector<128x128xbf16>
    %cst_14 = arith.constant dense<0.000000e+00> : vector<128x128xf32>
    %18 = tpu.matmul %16, %17, %cst_14 {dimension_numbers = #tpu.dot_dimension_numbers<[1], [0], [0], [1], [0, 0, 1, 1], [], []>} : vector<128x128xbf16>, vector<128x128xbf16>, vector<128x128xf32> -> vector<128x128xf32>
    %c0_15 = arith.constant 0 : index
    %c0_16 = arith.constant 0 : index
    %19 = vector.load %arg7[%c0_15, %c0_16] : memref<1x128xf32, #tpu.memory_space<vmem>>, vector<1x128xf32>
    %20 = vector.broadcast %19 : vector<1x128xf32> to vector<128x128xf32>
    %21 = arith.addf %18, %20 : vector<128x128xf32>
    %c0_17 = arith.constant 0 : index
    %c0_18 = arith.constant 0 : index
    %22 = vector.load %arg8[%c0_17, %c0_18] : memref<128x128xf32, #tpu.memory_space<vmem>>, vector<128x128xf32>
    tpu.vector_store %arg8[%c0_17, %c0_18], %21 {strides = array<i32>} : memref<128x128xf32, #tpu.memory_space<vmem>>, vector<128x128xf32>,
    return
  }
  func.func @transform_0(%arg0: i32) -> (i32, i32) {
    %c0_i32 = arith.constant 0 : i32
    %c0_i32_0 = arith.constant 0 : i32
    return %arg0, %c0_i32 : i32, i32
  }
  func.func @transform_1(%arg0: i32) -> (i32, i32) {
    %c0_i32 = arith.constant 0 : i32
    %c0_i32_0 = arith.constant 0 : i32
    %c0_i32_1 = arith.constant 0 : i32
    return %c0_i32, %c0_i32_0 : i32, i32
  }
  func.func @transform_2(%arg0: i32) -> (i32, i32) {
    %c0_i32 = arith.constant 0 : i32
    %c0_i32_0 = arith.constant 0 : i32
    %c0_i32_1 = arith.constant 0 : i32
    return %c0_i32, %c0_i32_0 : i32, i32
  }
  func.func @transform_3(%arg0: i32) -> (i32, i32) {
    %c0_i32 = arith.constant 0 : i32
    %c0_i32_0 = arith.constant 0 : i32
    %c0_i32_1 = arith.constant 0 : i32
    return %c0_i32, %c0_i32_0 : i32, i32
  }
  func.func @transform_4(%arg0: i32) -> (i32, i32) {
    %c0_i32 = arith.constant 0 : i32
    %c0_i32_0 = arith.constant 0 : i32
    %c0_i32_1 = arith.constant 0 : i32
    return %c0_i32, %c0_i32_0 : i32, i32
  }
  func.func @transform_5(%arg0: i32) -> (i32, i32) {
    %c0_i32 = arith.constant 0 : i32
    %c0_i32_0 = arith.constant 0 : i32
    %c0_i32_1 = arith.constant 0 : i32
    return %c0_i32, %c0_i32_0 : i32, i32
  }
  func.func @transform_6(%arg0: i32) -> (i32, i32) {
    %c0_i32 = arith.constant 0 : i32
    %c0_i32_0 = arith.constant 0 : i32
    %c0_i32_1 = arith.constant 0 : i32
    return %c0_i32, %c0_i32_0 : i32, i32
  }
  func.func @transform_7(%arg0: i32) -> (i32, i32) {
    %c0_i32 = arith.constant 0 : i32
    %c0_i32_0 = arith.constant 0 : i32
    return %arg0, %c0_i32 : i32, i32
  }
}

</mosaic_0001>

<llo_original>
// kernel: tpu_custom_call.1
$region0: #{tpu_custom_call.1}
  #allocation0 [shape = 'u32[]', space=smem, size = 0x4, offset = 0x4, fixed_abs, tag = 'smem constant byte address 0x4 - core index']
  #allocation1 [shape = 'u32[144,128]{1,0:T(1,128)}', space=vmem, size = 0x12000, scoped, tag = 'internal scratch']
  %s0 = inlined_call_operand.hbm [shape: bf16[128,256], index: 0, kind: input, shape index: {}]
  %s1 = inlined_call_operand.hbm [shape: bf16[256,128], index: 1, kind: input, shape index: {}]
  %s2 = inlined_call_operand.vmem [shape: f32[1,128], index: 2, kind: input, shape index: {}]
  %s3 = inlined_call_operand.hbm [shape: bf16[128,128], index: 3, kind: input, shape index: {}]
  %s4 = inlined_call_operand.vmem [shape: f32[1,128], index: 4, kind: input, shape index: {}]
  %s5 = inlined_call_operand.hbm [shape: bf16[128,128], index: 5, kind: input, shape index: {}]
  %s6 = inlined_call_operand.vmem [shape: f32[1,128], index: 6, kind: input, shape index: {}]
  %s7 = inlined_call_operand.hbm [shape: f32[128,128], index: 7, kind: output, shape index: {}]
  %s8 = sld [smem:[#allocation0]]
  $region54: #{tpu_custom_call.1} parent=0
    _
  %s10 = ssub.s32 1, %s8
  %s11 = scalar_select 0, %s10, %s8
  $region1: #{tpu_custom_call.1} parent=0
    #allocation2 [shape = 'u8[65536]{0}', space=vmem, size = 0x10000, scoped, tag = 'input window, operand 0, single buffered']
    #allocation3 [shape = 's32[1]{0}', space=sflag, size = 0x4, scoped, tag = 'scoped memory for tpu_custom_call.1']
    #allocation4 [shape = 's32[1]{0}', space=sflag, size = 0x4, scoped, tag = 'scoped memory for tpu_custom_call.1']
    #allocation5 [shape = 'u8[65536]{0}', space=vmem, size = 0x10000, scoped, tag = 'input window, operand 1, single buffered']
    #allocation6 [shape = 's32[1]{0}', space=sflag, size = 0x4, scoped, tag = 'scoped memory for tpu_custom_call.1']
    #allocation7 [shape = 'u8[32768]{0}', space=vmem, size = 0x8000, scoped, tag = 'input window, operand 3, single buffered']
    #allocation8 [shape = 'u8[32768]{0}', space=vmem, size = 0x8000, scoped, tag = 'input window, operand 5, single buffered']
    #allocation9 [shape = 's32[1]{0}', space=sflag, size = 0x4, scoped, tag = 'scoped memory for tpu_custom_call.1']
    #allocation10 [shape = 'u8[65536]{0}', space=vmem, size = 0x10000, scoped, tag = 'output window, operand 0, single buffered']
    %12 = vsyncpa [#allocation3], 0
    %13 = vsyncpa [#allocation6], 0
    %14 = vsyncpa [#allocation9], 0
    %15 = vsyncpa [#allocation4], 0
    // Predicated region
    $region2: #{tpu_custom_call.1} parent=1 // pred_check
      _
    $region3: #{tpu_custom_call.1} parent=1 // pred_check_branch
      %17 = sbr.rel (0) target = $region5
    $region4: #{tpu_custom_call.1} parent=1 // pred_region
      %s19 = ssub.s32 2048, 2048
      %20 = vsyncadd [#allocation3], %s19
      %s21 = sshll.u32 [#allocation2], 4
      %s22 = int_to_ptr.vmem [resolvable:$true] %s21
      %27 = dma.hbm_to_vmem [thread:$0]  %s0, 2048, %s22, [#allocation3], 128, 128, 8
    $region5: #{tpu_custom_call.1} parent=1 // pred_fallthru
      _
    // Predicated region
    $region6: #{tpu_custom_call.1} parent=1 // pred_check
      _
    $region7: #{tpu_custom_call.1} parent=1 // pred_check_branch
      %29 = sbr.rel (0) target = $region9
    $region8: #{tpu_custom_call.1} parent=1 // pred_region
      %s31 = ssub.s32 2048, 2048
      %32 = vsyncadd [#allocation6], %s31
      %s33 = sshll.u32 [#allocation5], 4
      %s34 = int_to_ptr.vmem [resolvable:$true] %s33
      %39 = dma.hbm_to_vmem [thread:$0]  %s1, 2048, %s34, [#allocation6], 64, 64, 4
    $region9: #{tpu_custom_call.1} parent=1 // pred_fallthru
      _
    // Predicated region
    $region10: #{tpu_custom_call.1} parent=1 // pred_check
      _
    $region11: #{tpu_custom_call.1} parent=1 // pred_check_branch
      %41 = sbr.rel (0) target = $region13
    $region12: #{tpu_custom_call.1} parent=1 // pred_region
      _
    $region13: #{tpu_custom_call.1} parent=1 // pred_fallthru
      _
    // Predicated region
    $region14: #{tpu_custom_call.1} parent=1 // pred_check
      _
    $region15: #{tpu_custom_call.1} parent=1 // pred_check_branch
      %43 = sbr.rel (0) target = $region17
    $region16: #{tpu_custom_call.1} parent=1 // pred_region
      %s45 = ssub.s32 1024, 1024
      %46 = vsyncadd [#allocation6], %s45
      %s47 = sshll.u32 [#allocation7], 4
      %s48 = int_to_ptr.vmem [resolvable:$true] %s47
      %53 = dma.hbm_to_vmem [thread:$0]  %s3, 1024, %s48, [#allocation6], 64, 64, 4
    $region17: #{tpu_custom_call.1} parent=1 // pred_fallthru
      _
    // Predicated region
    $region18: #{tpu_custom_call.1} parent=1 // pred_check
      _
    $region19: #{tpu_custom_call.1} parent=1 // pred_check_branch
      %55 = sbr.rel (0) target = $region21
    $region20: #{tpu_custom_call.1} parent=1 // pred_region
      _
    $region21: #{tpu_custom_call.1} parent=1 // pred_fallthru
      _
    // Predicated region
    $region22: #{tpu_custom_call.1} parent=1 // pred_check
      _
    $region23: #{tpu_custom_call.1} parent=1 // pred_check_branch
      %57 = sbr.rel (0) target = $region25
    $region24: #{tpu_custom_call.1} parent=1 // pred_region
      %s59 = ssub.s32 1024, 1024
      %60 = vsyncadd [#allocation9], %s59
      %s61 = sshll.u32 [#allocation8], 4
      %s62 = int_to_ptr.vmem [resolvable:$true] %s61
      %67 = dma.hbm_to_vmem [thread:$0]  %s5, 1024, %s62, [#allocation9], 64, 64, 4
    $region25: #{tpu_custom_call.1} parent=1 // pred_fallthru
      _
    // Predicated region
    $region26: #{tpu_custom_call.1} parent=1 // pred_check
      _
    $region27: #{tpu_custom_call.1} parent=1 // pred_check_branch
      %69 = sbr.rel (0) target = $region29
    $region28: #{tpu_custom_call.1} parent=1 // pred_region
      _
    $region29: #{tpu_custom_call.1} parent=1 // pred_fallthru
      _
    // Predicated region
    $region30: #{tpu_custom_call.1} parent=1 // pred_check
      _
    $region31: #{tpu_custom_call.1} parent=1 // pred_check_branch
      %71 = sbr.rel (0) target = $region33
    $region32: #{tpu_custom_call.1} parent=1 // pred_region
      %72 = dma.done [#allocation3], 2048
    $region33: #{tpu_custom_call.1} parent=1 // pred_fallthru
      _
    // Predicated region
    $region34: #{tpu_custom_call.1} parent=1 // pred_check
      _
    $region35: #{tpu_custom_call.1} parent=1 // pred_check_branch
      %74 = sbr.rel (0) target = $region37
    $region36: #{tpu_custom_call.1} parent=1 // pred_region
      %75 = dma.done [#allocation6], 2048
    $region37: #{tpu_custom_call.1} parent=1 // pred_fallthru
      _
    // Predicated region
    $region38: #{tpu_custom_call.1} parent=1 // pred_check
      _
    $region39: #{tpu_custom_call.1} parent=1 // pred_check_branch
      %77 = sbr.rel (0) target = $region41
    $region40: #{tpu_custom_call.1} parent=1 // pred_region
      %78 = dma.done [#allocation6], 1024
    $region41: #{tpu_custom_call.1} parent=1 // pred_fallthru
      _
    // Predicated region
    $region42: #{tpu_custom_call.1} parent=1 // pred_check
      _
    $region43: #{tpu_custom_call.1} parent=1 // pred_check_branch
      %80 = sbr.rel (0) target = $region45
    $region44: #{tpu_custom_call.1} parent=1 // pred_region
      %81 = dma.done [#allocation9], 1024
    $region45: #{tpu_custom_call.1} parent=1 // pred_fallthru
      _
    %v83 = vld [vmem:[#allocation2] sm:$0xff]
    %v84 = vld [vmem:[#allocation2 + $0x8] sm:$0xff]
    %v85 = vld [vmem:[#allocation2 + $0x10] sm:$0xff]
    %v86 = vld [vmem:[#allocation2 + $0x18] sm:$0xff]
    %v87 = vld [vmem:[#allocation2 + $0x20] sm:$0xff]
    %v88 = vld [vmem:[#allocation2 + $0x28] sm:$0xff]
    %v89 = vld [vmem:[#allocation2 + $0x30] sm:$0xff]
    %v90 = vld [vmem:[#allocation2 + $0x38] sm:$0xff]
    %v91 = vld [vmem:[#allocation2 + $0x40] sm:$0xff]
    %v92 = vld [vmem:[#allocation2 + $0x48] sm:$0xff]
    %v93 = vld [vmem:[#allocation2 + $0x50] sm:$0xff]
    %v94 = vld [vmem:[#allocation2 + $0x58] sm:$0xff]
    %v95 = vld [vmem:[#allocation2 + $0x60] sm:$0xff]
    %v96 = vld [vmem:[#allocation2 + $0x68] sm:$0xff]
    %v97 = vld [vmem:[#allocation2 + $0x70] sm:$0xff]
    %v98 = vld [vmem:[#allocation2 + $0x78] sm:$0xff]
    %v99 = vld [vmem:[#allocation5] sm:$0xf]
    %v100 = vld [vmem:[#allocation5 + $0x4] sm:$0xf]
    %v101 = vld [vmem:[#allocation5 + $0x8] sm:$0xf]
    %v102 = vld [vmem:[#allocation5 + $0xc] sm:$0xf]
    %v103 = vld [vmem:[#allocation5 + $0x10] sm:$0xf]
    %v104 = vld [vmem:[#allocation5 + $0x14] sm:$0xf]
    %v105 = vld [vmem:[#allocation5 + $0x18] sm:$0xf]
    %v106 = vld [vmem:[#allocation5 + $0x1c] sm:$0xf]
    %v107 = vld [vmem:[#allocation5 + $0x20] sm:$0xf]
    %v108 = vld [vmem:[#allocation5 + $0x24] sm:$0xf]
    %v109 = vld [vmem:[#allocation5 + $0x28] sm:$0xf]
    %v110 = vld [vmem:[#allocation5 + $0x2c] sm:$0xf]
    %v111 = vld [vmem:[#allocation5 + $0x30] sm:$0xf]
    %v112 = vld [vmem:[#allocation5 + $0x34] sm:$0xf]
    %v113 = vld [vmem:[#allocation5 + $0x38] sm:$0xf]
    %v114 = vld [vmem:[#allocation5 + $0x3c] sm:$0xf]
    %v115 = vld [vmem:[#allocation5 + $0x40] sm:$0xf]
    %v116 = vld [vmem:[#allocation5 + $0x44] sm:$0xf]
    %v117 = vld [vmem:[#allocation5 + $0x48] sm:$0xf]
    %v118 = vld [vmem:[#allocation5 + $0x4c] sm:$0xf]
    %v119 = vld [vmem:[#allocation5 + $0x50] sm:$0xf]
    %v120 = vld [vmem:[#allocation5 + $0x54] sm:$0xf]
    %v121 = vld [vmem:[#allocation5 + $0x58] sm:$0xf]
    %v122 = vld [vmem:[#allocation5 + $0x5c] sm:$0xf]
    %v123 = vld [vmem:[#allocation5 + $0x60] sm:$0xf]
    %v124 = vld [vmem:[#allocation5 + $0x64] sm:$0xf]
    %v125 = vld [vmem:[#allocation5 + $0x68] sm:$0xf]
    %v126 = vld [vmem:[#allocation5 + $0x6c] sm:$0xf]
    %v127 = vld [vmem:[#allocation5 + $0x70] sm:$0xf]
    %v128 = vld [vmem:[#allocation5 + $0x74] sm:$0xf]
    %v129 = vld [vmem:[#allocation5 + $0x78] sm:$0xf]
    %v130 = vld [vmem:[#allocation5 + $0x7c] sm:$0xf]
    %v131 = vld [vmem:[%s2] sm:$0x1]
    %v133 = vlaneseq
    %v134 = vshrl.u32 %v133, 7
    %v135 = vsub.s32 0, %v134
    %v136 = vrot.slane %v131, %v135
    %v154 = vunpack.c.l.b16 %v83
    %v155 = vunpack.c.h.b16 %v83
    %v156 = vunpack.c.l.b16 %v84
    %v157 = vunpack.c.h.b16 %v84
    %v158 = vunpack.c.l.b16 %v85
    %v159 = vunpack.c.h.b16 %v85
    %v160 = vunpack.c.l.b16 %v86
    %v161 = vunpack.c.h.b16 %v86
    %v162 = vunpack.c.l.b16 %v87
    %v163 = vunpack.c.h.b16 %v87
    %v164 = vunpack.c.l.b16 %v88
    %v165 = vunpack.c.h.b16 %v88
    %v166 = vunpack.c.l.b16 %v89
    %v167 = vunpack.c.h.b16 %v89
    %v168 = vunpack.c.l.b16 %v90
    %v169 = vunpack.c.h.b16 %v90
    %v170 = vunpack.c.l.b16 %v91
    %v171 = vunpack.c.h.b16 %v91
    %v172 = vunpack.c.l.b16 %v92
    %v173 = vunpack.c.h.b16 %v92
    %v174 = vunpack.c.l.b16 %v93
    %v175 = vunpack.c.h.b16 %v93
    %v176 = vunpack.c.l.b16 %v94
    %v177 = vunpack.c.h.b16 %v94
    %v178 = vunpack.c.l.b16 %v95
    %v179 = vunpack.c.h.b16 %v95
    %v180 = vunpack.c.l.b16 %v96
    %v181 = vunpack.c.h.b16 %v96
    %v182 = vunpack.c.l.b16 %v97
    %v183 = vunpack.c.h.b16 %v97
    %v184 = vunpack.c.l.b16 %v98
    %v185 = vunpack.c.h.b16 %v98
    %v186 = vpack.c.b16 %v156, %v154
    %v187 = vpack.c.b16 %v157, %v155
    %v188 = vpack.c.b16 %v160, %v158
    %v189 = vpack.c.b16 %v161, %v159
    %v190 = vpack.c.b16 %v164, %v162
    %v191 = vpack.c.b16 %v165, %v163
    %v192 = vpack.c.b16 %v168, %v166
    %v193 = vpack.c.b16 %v169, %v167
    %v194 = vpack.c.b16 %v172, %v170
    %v195 = vpack.c.b16 %v173, %v171
    %v196 = vpack.c.b16 %v176, %v174
    %v197 = vpack.c.b16 %v177, %v175
    %v198 = vpack.c.b16 %v180, %v178
    %v199 = vpack.c.b16 %v181, %v179
    %v200 = vpack.c.b16 %v184, %v182
    %v201 = vpack.c.b16 %v185, %v183
    %v250 = vunpack.c.l.b16 %v99
    %v251 = vunpack.c.l.b16 %v100
    %v252 = vunpack.c.l.b16 %v101
    %v253 = vunpack.c.l.b16 %v102
    %v254 = vunpack.c.l.b16 %v103
    %v255 = vunpack.c.l.b16 %v104
    %v256 = vunpack.c.l.b16 %v105
    %v257 = vunpack.c.l.b16 %v106
    %v258 = vunpack.c.l.b16 %v107
    %v259 = vunpack.c.l.b16 %v108
    %v260 = vunpack.c.l.b16 %v109
    %v261 = vunpack.c.l.b16 %v110
    %v262 = vunpack.c.l.b16 %v111
    %v263 = vunpack.c.l.b16 %v112
    %v264 = vunpack.c.l.b16 %v113
    %v265 = vunpack.c.l.b16 %v114
    %v266 = vunpack.c.l.b16 %v115
    %v267 = vunpack.c.l.b16 %v116
    %v268 = vunpack.c.l.b16 %v117
    %v269 = vunpack.c.l.b16 %v118
    %v270 = vunpack.c.l.b16 %v119
    %v271 = vunpack.c.l.b16 %v120
    %v272 = vunpack.c.l.b16 %v121
    %v273 = vunpack.c.l.b16 %v122
    %v274 = vunpack.c.l.b16 %v123
    %v275 = vunpack.c.l.b16 %v124
    %v276 = vunpack.c.l.b16 %v125
    %v277 = vunpack.c.l.b16 %v126
    %v278 = vunpack.c.l.b16 %v127
    %v279 = vunpack.c.l.b16 %v128
    %v280 = vunpack.c.l.b16 %v129
    %v281 = vunpack.c.l.b16 %v130
    %v282 = vpack.c.b16 %v251, %v250
    %v283 = vpack.c.b16 %v253, %v252
    %v284 = vpack.c.b16 %v255, %v254
    %v285 = vpack.c.b16 %v257, %v256
    %v286 = vpack.c.b16 %v259, %v258
    %v287 = vpack.c.b16 %v261, %v260
    %v288 = vpack.c.b16 %v263, %v262
    %v289 = vpack.c.b16 %v265, %v264
    %v290 = vpack.c.b16 %v267, %v266
    %v291 = vpack.c.b16 %v269, %v268
    %v292 = vpack.c.b16 %v271, %v270
    %v293 = vpack.c.b16 %v273, %v272
    %v294 = vpack.c.b16 %v275, %v274
    %v295 = vpack.c.b16 %v277, %v276
    %v296 = vpack.c.b16 %v279, %v278
    %v297 = vpack.c.b16 %v281, %v280
    %314 = vmatprep.subr.bf16.mxu0 0
    %315 = vmatpush1.bf16.msra.mxu0 %v282
    %316 = vmatprep.subr.bf16.mxu0 0
    %317 = vmatpush1.bf16.msra.mxu0 %v283
    %318 = vmatprep.subr.bf16.mxu0 0
    %319 = vmatpush1.bf16.msra.mxu0 %v284
    %320 = vmatprep.subr.bf16.mxu0 0
    %321 = vmatpush1.bf16.msra.mxu0 %v285
    %322 = vmatprep.subr.bf16.mxu0 0
    %323 = vmatpush1.bf16.msra.mxu0 %v286
    %324 = vmatprep.subr.bf16.mxu0 0
    %325 = vmatpush1.bf16.msra.mxu0 %v287
    %326 = vmatprep.subr.bf16.mxu0 0
    %327 = vmatpush1.bf16.msra.mxu0 %v288
    %328 = vmatprep.subr.bf16.mxu0 0
    %329 = vmatpush1.bf16.msra.mxu0 %v289
    %330 = vmatprep.subr.bf16.mxu0 0
    %331 = vmatpush1.bf16.msra.mxu0 %v290
    %332 = vmatprep.subr.bf16.mxu0 0
    %333 = vmatpush1.bf16.msra.mxu0 %v291
    %334 = vmatprep.subr.bf16.mxu0 0
    %335 = vmatpush1.bf16.msra.mxu0 %v292
    %336 = vmatprep.subr.bf16.mxu0 0
    %337 = vmatpush1.bf16.msra.mxu0 %v293
    %338 = vmatprep.subr.bf16.mxu0 0
    %339 = vmatpush1.bf16.msra.mxu0 %v294
    %340 = vmatprep.subr.bf16.mxu0 0
    %341 = vmatpush1.bf16.msra.mxu0 %v295
    %342 = vmatprep.subr.bf16.mxu0 0
    %343 = vmatpush1.bf16.msra.mxu0 %v296
    %344 = vmatprep.subr.bf16.mxu0 0
    %345 = vmatpush1.bf16.msra.mxu0 %v297
    %346 = vmatprep.mubr.bf16.mxu0 %v187
    %347 = vmatmul.mubr.bf16.gmra.mrb[0].mxu0 %v186
    %v348 = vpop.f32.mrb[0].mxu0
    %v349 = vadd.f32 %v136, %v348
    %v350 = vpop.f32.mrb[0].mxu0
    %v351 = vpop.f32.mrb[0].mxu0
    %v352 = vadd.f32 %v136, %v351
    %v353 = vpop.f32.mrb[0].mxu0
    %354 = vmatprep.mubr.bf16.mxu0 %v189
    %355 = vmatmul.mubr.bf16.gmra.mrb[0].mxu0 %v188
    %v356 = vpop.f32.mrb[0].mxu0
    %v357 = vadd.f32 %v136, %v356
    %v358 = vpop.f32.mrb[0].mxu0
    %v359 = vpop.f32.mrb[0].mxu0
    %v360 = vadd.f32 %v136, %v359
    %v361 = vpop.f32.mrb[0].mxu0
    %362 = vmatprep.mubr.bf16.mxu0 %v191
    %363 = vmatmul.mubr.bf16.gmra.mrb[0].mxu0 %v190
    %v364 = vpop.f32.mrb[0].mxu0
    %v365 = vadd.f32 %v136, %v364
    %v366 = vpop.f32.mrb[0].mxu0
    %v367 = vpop.f32.mrb[0].mxu0
    %v368 = vadd.f32 %v136, %v367
    %v369 = vpop.f32.mrb[0].mxu0
    %370 = vmatprep.mubr.bf16.mxu0 %v193
    %371 = vmatmul.mubr.bf16.gmra.mrb[0].mxu0 %v192
    %v372 = vpop.f32.mrb[0].mxu0
    %v373 = vadd.f32 %v136, %v372
    %v374 = vpop.f32.mrb[0].mxu0
    %v375 = vpop.f32.mrb[0].mxu0
    %v376 = vadd.f32 %v136, %v375
    %v377 = vpop.f32.mrb[0].mxu0
    %378 = vmatprep.mubr.bf16.mxu0 %v195
    %379 = vmatmul.mubr.bf16.gmra.mrb[0].mxu0 %v194
    %v380 = vpop.f32.mrb[0].mxu0
    %v381 = vadd.f32 %v136, %v380
    %v382 = vpop.f32.mrb[0].mxu0
    %v383 = vpop.f32.mrb[0].mxu0
    %v384 = vadd.f32 %v136, %v383
    %v385 = vpop.f32.mrb[0].mxu0
    %386 = vmatprep.mubr.bf16.mxu0 %v197
    %387 = vmatmul.mubr.bf16.gmra.mrb[0].mxu0 %v196
    %v388 = vpop.f32.mrb[0].mxu0
    %v389 = vadd.f32 %v136, %v388
    %v390 = vpop.f32.mrb[0].mxu0
    %v391 = vpop.f32.mrb[0].mxu0
    %v392 = vadd.f32 %v136, %v391
    %v393 = vpop.f32.mrb[0].mxu0
    %394 = vmatprep.mubr.bf16.mxu0 %v199
    %395 = vmatmul.mubr.bf16.gmra.mrb[0].mxu0 %v198
    %v396 = vpop.f32.mrb[0].mxu0
    %v397 = vadd.f32 %v136, %v396
    %v398 = vpop.f32.mrb[0].mxu0
    %v399 = vpop.f32.mrb[0].mxu0
    %v400 = vadd.f32 %v136, %v399
    %v401 = vpop.f32.mrb[0].mxu0
    %402 = vmatprep.mubr.bf16.mxu0 %v201
    %403 = vmatmul.mubr.bf16.gmra.mrb[0].mxu0 %v200
    %v404 = vpop.f32.mrb[0].mxu0
    %v405 = vadd.f32 %v136, %v404
    %v406 = vpop.f32.mrb[0].mxu0
    %v407 = vpop.f32.mrb[0].mxu0
    %v408 = vadd.f32 %v136, %v407
    %v409 = vpop.f32.mrb[0].mxu0
    %410 = vdwg.mxu0
    %v411 = vmax.f32 %v349, 0.0
    %v412 = vmax.f32 %v352, 0.0
    %v413 = vmax.f32 %v357, 0.0
    %v414 = vmax.f32 %v360, 0.0
    %v415 = vmax.f32 %v365, 0.0
    %v416 = vmax.f32 %v368, 0.0
    %v417 = vmax.f32 %v373, 0.0
    %v418 = vmax.f32 %v376, 0.0
    %v419 = vmax.f32 %v381, 0.0
    %v420 = vmax.f32 %v384, 0.0
    %v421 = vmax.f32 %v389, 0.0
    %v422 = vmax.f32 %v392, 0.0
    %v423 = vmax.f32 %v397, 0.0
    %v424 = vmax.f32 %v400, 0.0
    %v425 = vmax.f32 %v405, 0.0
    %v426 = vmax.f32 %v408, 0.0
    %v427 = vpack.c.bf16 %v412, %v411
    %v428 = vpack.c.bf16 %v414, %v413
    %v429 = vpack.c.bf16 %v416, %v415
    %v430 = vpack.c.bf16 %v418, %v417
    %v431 = vpack.c.bf16 %v420, %v419
    %v432 = vpack.c.bf16 %v422, %v421
    %v433 = vpack.c.bf16 %v424, %v423
    %v434 = vpack.c.bf16 %v426, %v425
    %v435 = vld [vmem:[#allocation7] sm:$0xf]
    %v436 = vld [vmem:[#allocation7 + $0x4] sm:$0xf]
    %v437 = vld [vmem:[#allocation7 + $0x8] sm:$0xf]
    %v438 = vld [vmem:[#allocation7 + $0xc] sm:$0xf]
    %v439 = vld [vmem:[#allocation7 + $0x10] sm:$0xf]
    %v440 = vld [vmem:[#allocation7 + $0x14] sm:$0xf]
    %v441 = vld [vmem:[#allocation7 + $0x18] sm:$0xf]
    %v442 = vld [vmem:[#allocation7 + $0x1c] sm:$0xf]
    %v443 = vld [vmem:[#allocation7 + $0x20] sm:$0xf]
    %v444 = vld [vmem:[#allocation7 + $0x24] sm:$0xf]
    %v445 = vld [vmem:[#allocation7 + $0x28] sm:$0xf]
    %v446 = vld [vmem:[#allocation7 + $0x2c] sm:$0xf]
    %v447 = vld [vmem:[#allocation7 + $0x30] sm:$0xf]
    %v448 = vld [vmem:[#allocation7 + $0x34] sm:$0xf]
    %v449 = vld [vmem:[#allocation7 + $0x38] sm:$0xf]
    %v450 = vld [vmem:[#allocation7 + $0x3c] sm:$0xf]
    %v451 = vld [vmem:[%s4] sm:$0x1]
    %v453 = vlaneseq
    %v454 = vshrl.u32 %v453, 7
    %v455 = vsub.s32 0, %v454
    %v456 = vrot.slane %v451, %v455
    %v474 = vunpack.c.l.b16 %v435
    %v475 = vunpack.c.l.b16 %v436
    %v476 = vunpack.c.l.b16 %v437
    %v477 = vunpack.c.l.b16 %v438
    %v478 = vunpack.c.l.b16 %v439
    %v479 = vunpack.c.l.b16 %v440
    %v480 = vunpack.c.l.b16 %v441
    %v481 = vunpack.c.l.b16 %v442
    %v482 = vunpack.c.l.b16 %v443
    %v483 = vunpack.c.l.b16 %v444
    %v484 = vunpack.c.l.b16 %v445
    %v485 = vunpack.c.l.b16 %v446
    %v486 = vunpack.c.l.b16 %v447
    %v487 = vunpack.c.l.b16 %v448
    %v488 = vunpack.c.l.b16 %v449
    %v489 = vunpack.c.l.b16 %v450
    %v490 = vpack.c.b16 %v475, %v474
    %v491 = vpack.c.b16 %v477, %v476
    %v492 = vpack.c.b16 %v479, %v478
    %v493 = vpack.c.b16 %v481, %v480
    %v494 = vpack.c.b16 %v483, %v482
    %v495 = vpack.c.b16 %v485, %v484
    %v496 = vpack.c.b16 %v487, %v486
    %v497 = vpack.c.b16 %v489, %v488
    %506 = vmatprep.subr.bf16.mxu0 0
    %507 = vmatpush1.bf16.msra.mxu0 %v490
    %508 = vmatprep.subr.bf16.mxu0 0
    %509 = vmatpush1.bf16.msra.mxu0 %v491
    %510 = vmatprep.subr.bf16.mxu0 0
    %511 = vmatpush1.bf16.msra.mxu0 %v492
    %512 = vmatprep.subr.bf16.mxu0 0
    %513 = vmatpush1.bf16.msra.mxu0 %v493
    %514 = vmatprep.subr.bf16.mxu0 0
    %515 = vmatpush1.bf16.msra.mxu0 %v494
    %516 = vmatprep.subr.bf16.mxu0 0
    %517 = vmatpush1.bf16.msra.mxu0 %v495
    %518 = vmatprep.subr.bf16.mxu0 0
    %519 = vmatpush1.bf16.msra.mxu0 %v496
    %520 = vmatprep.subr.bf16.mxu0 0
    %521 = vmatpush1.bf16.msra.mxu0 %v497
    %522 = vmatprep.subr.bf16.mxu0 0
    %523 = vmatpush1.bf16.msra.mxu0 0
    %524 = vmatprep.subr.bf16.mxu0 0
    %525 = vmatpush1.bf16.msra.mxu0 0
    %526 = vmatprep.subr.bf16.mxu0 0
    %527 = vmatpush1.bf16.msra.mxu0 0
    %528 = vmatprep.subr.bf16.mxu0 0
    %529 = vmatpush1.bf16.msra.mxu0 0
    %530 = vmatprep.subr.bf16.mxu0 0
    %531 = vmatpush1.bf16.msra.mxu0 0
    %532 = vmatprep.subr.bf16.mxu0 0
    %533 = vmatpush1.bf16.msra.mxu0 0
    %534 = vmatprep.subr.bf16.mxu0 0
    %535 = vmatpush1.bf16.msra.mxu0 0
    %536 = vmatprep.subr.bf16.mxu0 0
    %537 = vmatpush1.bf16.msra.mxu0 0
    %538 = vmatprep.mubr.bf16.mxu0 0
    %539 = vmatmul.mubr.bf16.gmra.mrb[0].mxu0 %v427
    %v540 = vpop.f32.mrb[0].mxu0
    %v541 = vadd.f32 %v456, %v540
    %v542 = vpop.f32.mrb[0].mxu0
    %v543 = vpop.f32.mrb[0].mxu0
    %v544 = vadd.f32 %v456, %v543
    %v545 = vpop.f32.mrb[0].mxu0
    %546 = vmatprep.mubr.bf16.mxu0 0
    %547 = vmatmul.mubr.bf16.gmra.mrb[0].mxu0 %v428
    %v548 = vpop.f32.mrb[0].mxu0
    %v549 = vadd.f32 %v456, %v548
    %v550 = vpop.f32.mrb[0].mxu0
    %v551 = vpop.f32.mrb[0].mxu0
    %v552 = vadd.f32 %v456, %v551
    %v553 = vpop.f32.mrb[0].mxu0
    %554 = vmatprep.mubr.bf16.mxu0 0
    %555 = vmatmul.mubr.bf16.gmra.mrb[0].mxu0 %v429
    %v556 = vpop.f32.mrb[0].mxu0
    %v557 = vadd.f32 %v456, %v556
    %v558 = vpop.f32.mrb[0].mxu0
    %v559 = vpop.f32.mrb[0].mxu0
    %v560 = vadd.f32 %v456, %v559
    %v561 = vpop.f32.mrb[0].mxu0
    %562 = vmatprep.mubr.bf16.mxu0 0
    %563 = vmatmul.mubr.bf16.gmra.mrb[0].mxu0 %v430
    %v564 = vpop.f32.mrb[0].mxu0
    %v565 = vadd.f32 %v456, %v564
    %v566 = vpop.f32.mrb[0].mxu0
    %v567 = vpop.f32.mrb[0].mxu0
    %v568 = vadd.f32 %v456, %v567
    %v569 = vpop.f32.mrb[0].mxu0
    %570 = vmatprep.mubr.bf16.mxu0 0
    %571 = vmatmul.mubr.bf16.gmra.mrb[0].mxu0 %v431
    %v572 = vpop.f32.mrb[0].mxu0
    %v573 = vadd.f32 %v456, %v572
    %v574 = vpop.f32.mrb[0].mxu0
    %v575 = vpop.f32.mrb[0].mxu0
    %v576 = vadd.f32 %v456, %v575
    %v577 = vpop.f32.mrb[0].mxu0
    %578 = vmatprep.mubr.bf16.mxu0 0
    %579 = vmatmul.mubr.bf16.gmra.mrb[0].mxu0 %v432
    %v580 = vpop.f32.mrb[0].mxu0
    %v581 = vadd.f32 %v456, %v580
    %v582 = vpop.f32.mrb[0].mxu0
    %v583 = vpop.f32.mrb[0].mxu0
    %v584 = vadd.f32 %v456, %v583
    %v585 = vpop.f32.mrb[0].mxu0
    %586 = vmatprep.mubr.bf16.mxu0 0
    %587 = vmatmul.mubr.bf16.gmra.mrb[0].mxu0 %v433
    %v588 = vpop.f32.mrb[0].mxu0
    %v589 = vadd.f32 %v456, %v588
    %v590 = vpop.f32.mrb[0].mxu0
    %v591 = vpop.f32.mrb[0].mxu0
    %v592 = vadd.f32 %v456, %v591
    %v593 = vpop.f32.mrb[0].mxu0
    %594 = vmatprep.mubr.bf16.mxu0 0
    %595 = vmatmul.mubr.bf16.gmra.mrb[0].mxu0 %v434
    %v596 = vpop.f32.mrb[0].mxu0
    %v597 = vadd.f32 %v456, %v596
    %v598 = vpop.f32.mrb[0].mxu0
    %v599 = vpop.f32.mrb[0].mxu0
    %v600 = vadd.f32 %v456, %v599
    %v601 = vpop.f32.mrb[0].mxu0
    %602 = vdwg.mxu0
    %v603 = vmax.f32 %v541, 0.0
    %v604 = vmax.f32 %v544, 0.0
    %v605 = vmax.f32 %v549, 0.0
    %v606 = vmax.f32 %v552, 0.0
    %v607 = vmax.f32 %v557, 0.0
    %v608 = vmax.f32 %v560, 0.0
    %v609 = vmax.f32 %v565, 0.0
    %v610 = vmax.f32 %v568, 0.0
    %v611 = vmax.f32 %v573, 0.0
    %v612 = vmax.f32 %v576, 0.0
    %v613 = vmax.f32 %v581, 0.0
    %v614 = vmax.f32 %v584, 0.0
    %v615 = vmax.f32 %v589, 0.0
    %v616 = vmax.f32 %v592, 0.0
    %v617 = vmax.f32 %v597, 0.0
    %v618 = vmax.f32 %v600, 0.0
    %v619 = vpack.c.bf16 %v604, %v603
    %v620 = vpack.c.bf16 %v606, %v605
    %v621 = vpack.c.bf16 %v608, %v607
    %v622 = vpack.c.bf16 %v610, %v609
    %v623 = vpack.c.bf16 %v612, %v611
    %v624 = vpack.c.bf16 %v614, %v613
    %v625 = vpack.c.bf16 %v616, %v615
    %v626 = vpack.c.bf16 %v618, %v617
    %v627 = vld [vmem:[#allocation8] sm:$0xf]
    %v628 = vld [vmem:[#allocation8 + $0x4] sm:$0xf]
    %v629 = vld [vmem:[#allocation8 + $0x8] sm:$0xf]
    %v630 = vld [vmem:[#allocation8 + $0xc] sm:$0xf]
    %v631 = vld [vmem:[#allocation8 + $0x10] sm:$0xf]
    %v632 = vld [vmem:[#allocation8 + $0x14] sm:$0xf]
    %v633 = vld [vmem:[#allocation8 + $0x18] sm:$0xf]
    %v634 = vld [vmem:[#allocation8 + $0x1c] sm:$0xf]
    %v635 = vld [vmem:[#allocation8 + $0x20] sm:$0xf]
    %v636 = vld [vmem:[#allocation8 + $0x24] sm:$0xf]
    %v637 = vld [vmem:[#allocation8 + $0x28] sm:$0xf]
    %v638 = vld [vmem:[#allocation8 + $0x2c] sm:$0xf]
    %v639 = vld [vmem:[#allocation8 + $0x30] sm:$0xf]
    %v640 = vld [vmem:[#allocation8 + $0x34] sm:$0xf]
    %v641 = vld [vmem:[#allocation8 + $0x38] sm:$0xf]
    %v642 = vld [vmem:[#allocation8 + $0x3c] sm:$0xf]
    %v643 = vld [vmem:[%s6] sm:$0x1]
    %v645 = vlaneseq
    %v646 = vshrl.u32 %v645, 7
    %v647 = vsub.s32 0, %v646
    %v648 = vrot.slane %v643, %v647
    %v666 = vunpack.c.l.b16 %v627
    %v667 = vunpack.c.l.b16 %v628
    %v668 = vunpack.c.l.b16 %v629
    %v669 = vunpack.c.l.b16 %v630
    %v670 = vunpack.c.l.b16 %v631
    %v671 = vunpack.c.l.b16 %v632
    %v672 = vunpack.c.l.b16 %v633
    %v673 = vunpack.c.l.b16 %v634
    %v674 = vunpack.c.l.b16 %v635
    %v675 = vunpack.c.l.b16 %v636
    %v676 = vunpack.c.l.b16 %v637
    %v677 = vunpack.c.l.b16 %v638
    %v678 = vunpack.c.l.b16 %v639
    %v679 = vunpack.c.l.b16 %v640
    %v680 = vunpack.c.l.b16 %v641
    %v681 = vunpack.c.l.b16 %v642
    %v682 = vpack.c.b16 %v667, %v666
    %v683 = vpack.c.b16 %v669, %v668
    %v684 = vpack.c.b16 %v671, %v670
    %v685 = vpack.c.b16 %v673, %v672
    %v686 = vpack.c.b16 %v675, %v674
    %v687 = vpack.c.b16 %v677, %v676
    %v688 = vpack.c.b16 %v679, %v678
    %v689 = vpack.c.b16 %v681, %v680
    %698 = vmatprep.subr.bf16.mxu0 0
    %699 = vmatpush1.bf16.msra.mxu0 %v682
    %700 = vmatprep.subr.bf16.mxu0 0
    %701 = vmatpush1.bf16.msra.mxu0 %v683
    %702 = vmatprep.subr.bf16.mxu0 0
    %703 = vmatpush1.bf16.msra.mxu0 %v684
    %704 = vmatprep.subr.bf16.mxu0 0
    %705 = vmatpush1.bf16.msra.mxu0 %v685
    %706 = vmatprep.subr.bf16.mxu0 0
    %707 = vmatpush1.bf16.msra.mxu0 %v686
    %708 = vmatprep.subr.bf16.mxu0 0
    %709 = vmatpush1.bf16.msra.mxu0 %v687
    %710 = vmatprep.subr.bf16.mxu0 0
    %711 = vmatpush1.bf16.msra.mxu0 %v688
    %712 = vmatprep.subr.bf16.mxu0 0
    %713 = vmatpush1.bf16.msra.mxu0 %v689
    %714 = vmatprep.subr.bf16.mxu0 0
    %715 = vmatpush1.bf16.msra.mxu0 0
    %716 = vmatprep.subr.bf16.mxu0 0
    %717 = vmatpush1.bf16.msra.mxu0 0
    %718 = vmatprep.subr.bf16.mxu0 0
    %719 = vmatpush1.bf16.msra.mxu0 0
    %720 = vmatprep.subr.bf16.mxu0 0
    %721 = vmatpush1.bf16.msra.mxu0 0
    %722 = vmatprep.subr.bf16.mxu0 0
    %723 = vmatpush1.bf16.msra.mxu0 0
    %724 = vmatprep.subr.bf16.mxu0 0
    %725 = vmatpush1.bf16.msra.mxu0 0
    %726 = vmatprep.subr.bf16.mxu0 0
    %727 = vmatpush1.bf16.msra.mxu0 0
    %728 = vmatprep.subr.bf16.mxu0 0
    %729 = vmatpush1.bf16.msra.mxu0 0
    %730 = vmatprep.mubr.bf16.mxu0 0
    %731 = vmatmul.mubr.bf16.gmra.mrb[0].mxu0 %v619
    %v732 = vpop.f32.mrb[0].mxu0
    %v733 = vadd.f32 %v648, %v732
    %v734 = vpop.f32.mrb[0].mxu0
    %v735 = vpop.f32.mrb[0].mxu0
    %v736 = vadd.f32 %v648, %v735
    %v737 = vpop.f32.mrb[0].mxu0
    %738 = vmatprep.mubr.bf16.mxu0 0
    %739 = vmatmul.mubr.bf16.gmra.mrb[0].mxu0 %v620
    %v740 = vpop.f32.mrb[0].mxu0
    %v741 = vadd.f32 %v648, %v740
    %v742 = vpop.f32.mrb[0].mxu0
    %v743 = vpop.f32.mrb[0].mxu0
    %v744 = vadd.f32 %v648, %v743
    %v745 = vpop.f32.mrb[0].mxu0
    %746 = vmatprep.mubr.bf16.mxu0 0
    %747 = vmatmul.mubr.bf16.gmra.mrb[0].mxu0 %v621
    %v748 = vpop.f32.mrb[0].mxu0
    %v749 = vadd.f32 %v648, %v748
    %v750 = vpop.f32.mrb[0].mxu0
    %v751 = vpop.f32.mrb[0].mxu0
    %v752 = vadd.f32 %v648, %v751
    %v753 = vpop.f32.mrb[0].mxu0
    %754 = vmatprep.mubr.bf16.mxu0 0
    %755 = vmatmul.mubr.bf16.gmra.mrb[0].mxu0 %v622
    %v756 = vpop.f32.mrb[0].mxu0
    %v757 = vadd.f32 %v648, %v756
    %v758 = vpop.f32.mrb[0].mxu0
    %v759 = vpop.f32.mrb[0].mxu0
    %v760 = vadd.f32 %v648, %v759
    %v761 = vpop.f32.mrb[0].mxu0
    %762 = vmatprep.mubr.bf16.mxu0 0
    %763 = vmatmul.mubr.bf16.gmra.mrb[0].mxu0 %v623
    %v764 = vpop.f32.mrb[0].mxu0
    %v765 = vadd.f32 %v648, %v764
    %v766 = vpop.f32.mrb[0].mxu0
    %v767 = vpop.f32.mrb[0].mxu0
    %v768 = vadd.f32 %v648, %v767
    %v769 = vpop.f32.mrb[0].mxu0
    %770 = vmatprep.mubr.bf16.mxu0 0
    %771 = vmatmul.mubr.bf16.gmra.mrb[0].mxu0 %v624
    %v772 = vpop.f32.mrb[0].mxu0
    %v773 = vadd.f32 %v648, %v772
    %v774 = vpop.f32.mrb[0].mxu0
    %v775 = vpop.f32.mrb[0].mxu0
    %v776 = vadd.f32 %v648, %v775
    %v777 = vpop.f32.mrb[0].mxu0
    %778 = vmatprep.mubr.bf16.mxu0 0
    %779 = vmatmul.mubr.bf16.gmra.mrb[0].mxu0 %v625
    %v780 = vpop.f32.mrb[0].mxu0
    %v781 = vadd.f32 %v648, %v780
    %v782 = vpop.f32.mrb[0].mxu0
    %v783 = vpop.f32.mrb[0].mxu0
    %v784 = vadd.f32 %v648, %v783
    %v785 = vpop.f32.mrb[0].mxu0
    %786 = vmatprep.mubr.bf16.mxu0 0
    %787 = vmatmul.mubr.bf16.gmra.mrb[0].mxu0 %v626
    %v788 = vpop.f32.mrb[0].mxu0
    %v789 = vadd.f32 %v648, %v788
    %v790 = vpop.f32.mrb[0].mxu0
    %v791 = vpop.f32.mrb[0].mxu0
    %v792 = vadd.f32 %v648, %v791
    %v793 = vpop.f32.mrb[0].mxu0
    %794 = vdwg.mxu0
    %795 = vst [vmem:[#allocation10] sm:$0xff] %v733
    %796 = vst [vmem:[#allocation10 + $0x8] sm:$0xff] %v736
    %797 = vst [vmem:[#allocation10 + $0x10] sm:$0xff] %v741
    %798 = vst [vmem:[#allocation10 + $0x18] sm:$0xff] %v744
    %799 = vst [vmem:[#allocation10 + $0x20] sm:$0xff] %v749
    %800 = vst [vmem:[#allocation10 + $0x28] sm:$0xff] %v752
    %801 = vst [vmem:[#allocation10 + $0x30] sm:$0xff] %v757
    %802 = vst [vmem:[#allocation10 + $0x38] sm:$0xff] %v760
    %803 = vst [vmem:[#allocation10 + $0x40] sm:$0xff] %v765
    %804 = vst [vmem:[#allocation10 + $0x48] sm:$0xff] %v768
    %805 = vst [vmem:[#allocation10 + $0x50] sm:$0xff] %v773
    %806 = vst [vmem:[#allocation10 + $0x58] sm:$0xff] %v776
    %807 = vst [vmem:[#allocation10 + $0x60] sm:$0xff] %v781
    %808 = vst [vmem:[#allocation10 + $0x68] sm:$0xff] %v784
    %809 = vst [vmem:[#allocation10 + $0x70] sm:$0xff] %v789
    %810 = vst [vmem:[#allocation10 + $0x78] sm:$0xff] %v792
    // Predicated region
    $region46: #{tpu_custom_call.1} parent=1 // pred_check
      _
    $region47: #{tpu_custom_call.1} parent=1 // pred_check_branch
      %812 = sbr.rel (0) target = $region49
    $region48: #{tpu_custom_call.1} parent=1 // pred_region
      %s814 = ssub.s32 2048, 2048
      %815 = vsyncadd [#allocation4], %s814
      %s816 = sshll.u32 [#allocation10], 4
      %s817 = int_to_ptr.vmem [resolvable:$true] %s816
      %822 = dma.vmem_to_hbm [thread:$0]  %s817, 2048, %s7, [#allocation4], 128, 128, 8
    $region49: #{tpu_custom_call.1} parent=1 // pred_fallthru
      _
    // Predicated region
    $region50: #{tpu_custom_call.1} parent=1 // pred_check
      _
    $region51: #{tpu_custom_call.1} parent=1 // pred_check_branch
      %824 = sbr.rel (0) target = $region53
    $region52: #{tpu_custom_call.1} parent=1 // pred_region
      %825 = dma.done [#allocation4], 2048
    $region53: #{tpu_custom_call.1} parent=1 // pred_fallthru
      _
    %826 = vsyncpa [#allocation3], 1
    %827 = vsyncpa [#allocation6], 1
    %828 = vsyncpa [#allocation9], 1
    %829 = vsyncpa [#allocation4], 1

</llo_original>
